<compile_context>
chip_gen: v7x
topology: tpu7x:2x2x1
jax: 0.10.0
libtpu: 0.0.40
codegen_flags: <defaults>
</compile_context>

<pallas_src>
from functools import partial

import numpy as np
import jax
import jax.numpy as jnp
from jax.experimental import pallas as pl
from jax.experimental.pallas import tpu as pltpu


LANE = 128      # vreg lane width  (last dim)
SUBLANE = 8     # vreg sublane width (second-to-last dim, f32)


# ---------------------------------------------------------------------------
# Module configuration (mirrors Projection.__init__)
# ---------------------------------------------------------------------------

def layer_units(input_size, output_size, num_layers=0):
    units = np.linspace(input_size, output_size, num_layers + 2)
    units = list(map(int, np.round(units, 0)))
    return units


INPUT_SIZE = 32
OUTPUT_SIZE = 16
HIDDEN_LAYERS = 1
HIDDEN_NONLINEARITY = "relu"
OUTPUT_NONLINEARITY = "tanh"


def _round_up(x, m):
    return ((x + m - 1) // m) * m


# ---------------------------------------------------------------------------
# Fused Pallas kernel:  h0 = x ; h_{i+1} = act_i(h_i @ W_i + b_i) ; out = h_L
# ---------------------------------------------------------------------------

def _apply_activation(y, activation):
    """f32 elementwise epilogue (kept in f32: v5e has no bf16 VPU/EUP)."""
    if activation is None:
        return y
    if activation == "relu":
        return jnp.maximum(y, 0.0)
    if activation == "tanh":
        return jnp.tanh(y)
    if activation == "leaky_relu":
        return jnp.where(y >= 0.0, y, 0.01 * y)
    if activation == "elu":
        # exp only on the non-positive side so discarded lanes cannot overflow
        return jnp.where(y >= 0.0, y, jnp.exp(jnp.minimum(y, 0.0)) - 1.0)
    if activation == "selu":
        alpha, scale = 1.6732632423543772, 1.0507009873554805
        return scale * jnp.where(
            y >= 0.0, y, alpha * (jnp.exp(jnp.minimum(y, 0.0)) - 1.0))
    raise ValueError(f"unknown activation: {activation}")


def _fused_projection_kernel(*refs, activations, compute_dtype):
    """refs = (x_ref, w0_ref, b0_ref, w1_ref, b1_ref, ..., out_ref).

    The intermediate activations never leave vregs/VMEM (no HBM round-trip).
    x / weights arrive already in compute_dtype (cast once in the wrapper),
    biases arrive in f32 and are added to the f32 accumulator."""
    n_layers = len(activations)
    x_ref = refs[0]
    wb_refs = refs[1:1 + 2 * n_layers]
    o_ref = refs[1 + 2 * n_layers]

    h = x_ref[...]                                   # compute_dtype
    for i, act in enumerate(activations):
        w = wb_refs[2 * i][...]                      # compute_dtype
        b = wb_refs[2 * i + 1][...]                  # (1, N) f32 -> broadcasts
        acc = jnp.dot(h.astype(compute_dtype), w,    # identity cast on layer 0
                      preferred_element_type=jnp.float32)
        h = _apply_activation(acc + b, act)          # f32 epilogue
    o_ref[...] = h.astype(o_ref.dtype)


def projection_forward(x, params, activations, *,
                       compute_dtype=jnp.float32, block_m=4096):
    """Fused forward pass for the whole Projection as one pallas_call.

    x: (batch, in_features) float32
    params: list of (W, b) with W stored as (in, out) = PyTorch weight.T
    compute_dtype: matmul input dtype (f32 default == PyTorch numerics;
                   bf16 halves input/weight HBM bytes, f32 accumulate).
    """
    compute_dtype = jnp.dtype(compute_dtype)
    M, K = x.shape
    n_layers = len(params)
    assert n_layers == len(activations) and n_layers >= 1

    # Feature dims: keep input (K) and final output unpadded; pad only the
    # intermediate dims to 128 (neutral zeros, weights tiny & VMEM-resident).
    dims = [K] + [w.shape[1] for (w, _) in params]
    pdims = [dims[0]] + [_round_up(d, LANE) for d in dims[1:-1]] + [dims[-1]]

    # Adaptive batch tiling: n_tiles tiles of tm rows each (tm aligned to the
    # packed-sublane granularity of compute_dtype; 8 for f32, 16 for bf16).
    row_align = SUBLANE * max(1, 4 // compute_dtype.itemsize)
    n_tiles = max(1, pl.cdiv(M, block_m))
    tm = _round_up(pl.cdiv(M, n_tiles), row_align)
    M_pad = n_tiles * tm

    # Input: cast once in the wrapper (no per-tile casts in the kernel); only
    # pad rows when the batch does not line up with the tiling.
    x_in = x if x.dtype == compute_dtype else x.astype(compute_dtype)
    if M_pad != M:
        x_in = jnp.zeros((M_pad, K), x_in.dtype).at[:M, :].set(x_in)

    in_specs = [pl.BlockSpec((tm, K), lambda i: (i, 0))]
    wb_inputs = []
    for li, (w, b) in enumerate(params):
        kin, kout = w.shape
        kin_p, kout_p = pdims[li], pdims[li + 1]
        w_p = w if w.dtype == compute_dtype else w.astype(compute_dtype)
        if (kin_p, kout_p) != (kin, kout):
            w_p = jnp.zeros((kin_p, kout_p), compute_dtype).at[:kin, :kout].set(w_p)
        b_p = b.reshape(1, kout).astype(jnp.float32)
        if kout_p != kout:
            b_p = jnp.zeros((1, kout_p), jnp.float32).at[:, :kout].set(b_p)
        wb_inputs += [w_p, b_p]
        # constant block index -> params DMA'd once, VMEM-resident across tiles
        in_specs += [pl.BlockSpec((kin_p, kout_p), lambda i: (0, 0)),
                     pl.BlockSpec((1, kout_p), lambda i: (0, 0))]

    n_out = dims[-1]
    out_itemsize = jnp.dtype(x.dtype).itemsize
    flops = 2 * M_pad * sum(pdims[i] * pdims[i + 1] for i in range(n_layers))
    transcendentals = M_pad * sum(
        pdims[i + 1] for i, a in enumerate(activations) if a in ("tanh", "elu", "selu"))
    bytes_accessed = (x_in.size * x_in.dtype.itemsize
                      + M_pad * n_out * out_itemsize
                      + sum(a.size * a.dtype.itemsize for a in wb_inputs))

    kernel = partial(_fused_projection_kernel,
                     activations=tuple(activations),
                     compute_dtype=compute_dtype)

    out_p = pl.pallas_call(
        kernel,
        out_shape=jax.ShapeDtypeStruct((M_pad, n_out), x.dtype),
        grid=(n_tiles,),
        in_specs=in_specs,
        out_specs=pl.BlockSpec((tm, n_out), lambda i: (i, 0)),
        compiler_params=pltpu.CompilerParams(
            dimension_semantics=("parallel",),
            vmem_limit_bytes=32 * 1024 * 1024),   # > v5e's 16 MiB scoped default
        cost_estimate=pl.CostEstimate(flops=flops,
                                      transcendentals=transcendentals,
                                      bytes_accessed=bytes_accessed),
    )(x_in, *wb_inputs)

    return out_p[:M] if M_pad != M else out_p


# ---------------------------------------------------------------------------
# Parameter init (xavier_uniform with gain, zero bias) — deterministic
# ---------------------------------------------------------------------------

def _calculate_gain(nonlinearity):
    if nonlinearity == "tanh":
        return 5.0 / 3.0
    if nonlinearity == "relu":
        return float(np.sqrt(2.0))
    if nonlinearity == "leaky_relu":
        return float(np.sqrt(2.0 / (1.0 + 0.01 ** 2)))
    return 1.0


def init_projection_params(key, units, hidden_nonlinearity):
    gain = 1.0
    if hidden_nonlinearity in {"tanh", "relu", "leaky_relu"}:
        gain = _calculate_gain(hidden_nonlinearity)
    params = []
    for in_size, out_size in zip(units, units[1:]):
        key, wk = jax.random.split(key)
        bound = gain * np.sqrt(6.0 / (in_size + out_size))
        # stored as (in, out) = PyTorch weight.T
        w = jax.random.uniform(wk, (in_size, out_size), jnp.float32,
                               minval=-bound, maxval=bound)
        b = jnp.zeros((out_size,), jnp.float32)
        params.append((w, b))
    return params


def build_activation_schedule(n_layers, hidden_nonlinearity, output_nonlinearity):
    """Replicates the Sequential construction: hidden nonlinearity after every
    Linear, last one popped, then optional output nonlinearity appended."""
    acts = ([hidden_nonlinearity] * n_layers if hidden_nonlinearity
            else [None] * n_layers)
    if hidden_nonlinearity:
        acts[-1] = None                      # layers.pop()
    if output_nonlinearity:
        acts[-1] = output_nonlinearity       # appended output nonlinearity
    return acts


# ---------------------------------------------------------------------------
# Demo + correctness checks
# ---------------------------------------------------------------------------

if __name__ == "__main__":
    key = jax.random.PRNGKey(0)
    key, xk, pk, xk2 = jax.random.split(key, 4)

    units = layer_units(INPUT_SIZE, OUTPUT_SIZE, HIDDEN_LAYERS)      # [32, 24, 16]
    params = init_projection_params(pk, units, HIDDEN_NONLINEARITY)
    acts = build_activation_schedule(len(params), HIDDEN_NONLINEARITY,
                                     OUTPUT_NONLINEARITY)            # ['relu','tanh']

    def reference(x, compute_dtype):
        h = x
        for (w, b), act in zip(params, acts):
            h = jnp.dot(h.astype(compute_dtype), w.astype(compute_dtype),
                        preferred_element_type=jnp.float32,
                        precision=jax.lax.Precision.HIGHEST) + b
            if act == "relu":
                h = jnp.maximum(h, 0.0)
            elif act == "tanh":
                h = jnp.tanh(h)
        return h

    # --- small batch, default f32 matmuls (matches PyTorch numerics) -------
    batch = 8
    x = jax.random.normal(xk, (batch, INPUT_SIZE), jnp.float32)
    out = jax.block_until_ready(projection_forward(x, params, acts))
    assert out.shape == (batch, OUTPUT_SIZE)
    np.testing.assert_allclose(np.asarray(out),
                               np.asarray(reference(x, jnp.float32)),
                               rtol=5e-3, atol=5e-3)

    # --- larger unaligned batch: multi-tile grid, row padding, bf16 MXU ----
    batch2 = 5000
    x2 = jax.random.normal(xk2, (batch2, INPUT_SIZE), jnp.float32)
    out2 = jax.block_until_ready(
        projection_forward(x2, params, acts,
                           compute_dtype=jnp.bfloat16, block_m=2048))
    assert out2.shape == (batch2, OUTPUT_SIZE)
    np.testing.assert_allclose(np.asarray(out2),
                               np.asarray(reference(x2, jnp.bfloat16)),
                               rtol=5e-3, atol=5e-3)

    print("KERNEL_OK")
</pallas_src>

<mosaic_0001>
module attributes {stable_mosaic.version = 11 : i64} {
  func.func @_fused_projection_kernel(%arg0: i32, %arg1: memref<8x32xf32, #tpu.memory_space<vmem>>, %arg2: memref<32x128xf32, #tpu.memory_space<vmem>>, %arg3: memref<1x128xf32, #tpu.memory_space<vmem>>, %arg4: memref<128x16xf32, #tpu.memory_space<vmem>>, %arg5: memref<1x16xf32, #tpu.memory_space<vmem>>, %arg6: memref<8x16xf32, #tpu.memory_space<vmem>>) attributes {dimension_semantics = [#tpu.dimension_semantics<parallel>], iteration_bounds = array<i64: 1>, scalar_prefetch = 0 : i64, scratch_operands = 0 : i64, tpu.core_type = #tpu.core_type<tc>, window_params = [{transform_indices = @transform_0, window_bounds = array<i64: 8, 32>}, {pipeline_mode = #tpu.pipeline_mode<synchronous>, transform_indices = @transform_1, window_bounds = array<i64: 32, 128>}, {pipeline_mode = #tpu.pipeline_mode<synchronous>, transform_indices = @transform_2, window_bounds = array<i64: 1, 128>}, {pipeline_mode = #tpu.pipeline_mode<synchronous>, transform_indices = @transform_3, window_bounds = array<i64: 128, 16>}, {pipeline_mode = #tpu.pipeline_mode<synchronous>, transform_indices = @transform_4, window_bounds = array<i64: 1, 16>}, {transform_indices = @transform_5, window_bounds = array<i64: 8, 16>}]} {
    %c0 = arith.constant 0 : index
    %c0_0 = arith.constant 0 : index
    %0 = vector.load %arg1[%c0, %c0_0] : memref<8x32xf32, #tpu.memory_space<vmem>>, vector<8x32xf32>
    %c0_1 = arith.constant 0 : index
    %c0_2 = arith.constant 0 : index
    %1 = vector.load %arg2[%c0_1, %c0_2] : memref<32x128xf32, #tpu.memory_space<vmem>>, vector<32x128xf32>
    %c0_3 = arith.constant 0 : index
    %c0_4 = arith.constant 0 : index
    %2 = vector.load %arg3[%c0_3, %c0_4] : memref<1x128xf32, #tpu.memory_space<vmem>>, vector<1x128xf32>
    %cst = arith.constant dense<0.000000e+00> : vector<8x128xf32>
    %3 = tpu.matmul %0, %1, %cst {dimension_numbers = #tpu.dot_dimension_numbers<[1], [0], [0], [1], [0, 0, 1, 1], [], []>} : vector<8x32xf32>, vector<32x128xf32>, vector<8x128xf32> -> vector<8x128xf32>
    %4 = vector.broadcast %2 : vector<1x128xf32> to vector<8x128xf32>
    %5 = arith.addf %3, %4 : vector<8x128xf32>
    %cst_5 = arith.constant 0.000000e+00 : f32
    %6 = vector.broadcast %cst_5 : f32 to vector<8x128xf32>
    %7 = arith.maximumf %5, %6 : vector<8x128xf32>
    %c0_6 = arith.constant 0 : index
    %c0_7 = arith.constant 0 : index
    %8 = vector.load %arg4[%c0_6, %c0_7] : memref<128x16xf32, #tpu.memory_space<vmem>>, vector<128x16xf32>
    %c0_8 = arith.constant 0 : index
    %c0_9 = arith.constant 0 : index
    %9 = vector.load %arg5[%c0_8, %c0_9] : memref<1x16xf32, #tpu.memory_space<vmem>>, vector<1x16xf32>
    %cst_10 = arith.constant dense<0.000000e+00> : vector<8x16xf32>
    %10 = tpu.matmul %7, %8, %cst_10 {dimension_numbers = #tpu.dot_dimension_numbers<[1], [0], [0], [1], [0, 0, 1, 1], [], []>} : vector<8x128xf32>, vector<128x16xf32>, vector<8x16xf32> -> vector<8x16xf32>
    %11 = vector.broadcast %9 : vector<1x16xf32> to vector<8x16xf32>
    %12 = arith.addf %10, %11 : vector<8x16xf32>
    %13 = math.tanh %12 : vector<8x16xf32>
    %c0_11 = arith.constant 0 : index
    %c0_12 = arith.constant 0 : index
    %14 = vector.load %arg6[%c0_11, %c0_12] : memref<8x16xf32, #tpu.memory_space<vmem>>, vector<8x16xf32>
    tpu.vector_store %arg6[%c0_11, %c0_12], %13 {strides = array<i32>} : memref<8x16xf32, #tpu.memory_space<vmem>>, vector<8x16xf32>,
    return
  }
  func.func @transform_0(%arg0: i32) -> (i32, i32) {
    %c0_i32 = arith.constant 0 : i32
    %c0_i32_0 = arith.constant 0 : i32
    return %arg0, %c0_i32 : i32, i32
  }
  func.func @transform_1(%arg0: i32) -> (i32, i32) {
    %c0_i32 = arith.constant 0 : i32
    %c0_i32_0 = arith.constant 0 : i32
    %c0_i32_1 = arith.constant 0 : i32
    return %c0_i32, %c0_i32_0 : i32, i32
  }
  func.func @transform_2(%arg0: i32) -> (i32, i32) {
    %c0_i32 = arith.constant 0 : i32
    %c0_i32_0 = arith.constant 0 : i32
    %c0_i32_1 = arith.constant 0 : i32
    return %c0_i32, %c0_i32_0 : i32, i32
  }
  func.func @transform_3(%arg0: i32) -> (i32, i32) {
    %c0_i32 = arith.constant 0 : i32
    %c0_i32_0 = arith.constant 0 : i32
    %c0_i32_1 = arith.constant 0 : i32
    return %c0_i32, %c0_i32_0 : i32, i32
  }
  func.func @transform_4(%arg0: i32) -> (i32, i32) {
    %c0_i32 = arith.constant 0 : i32
    %c0_i32_0 = arith.constant 0 : i32
    %c0_i32_1 = arith.constant 0 : i32
    return %c0_i32, %c0_i32_0 : i32, i32
  }
  func.func @transform_5(%arg0: i32) -> (i32, i32) {
    %c0_i32 = arith.constant 0 : i32
    %c0_i32_0 = arith.constant 0 : i32
    return %arg0, %c0_i32 : i32, i32
  }
}

</mosaic_0001>

<llo_original>
// kernel: tpu_custom_call.1
$region0: #{tpu_custom_call.1}
  #allocation0 [shape = 'u32[]', space=smem, size = 0x4, offset = 0x4, fixed_abs, tag = 'smem constant byte address 0x4 - core index']
  #allocation1 [shape = 'u32[144,128]{1,0:T(1,128)}', space=vmem, size = 0x12000, scoped, tag = 'internal scratch']
  %s0 = inlined_call_operand.vmem [shape: f32[8,32], index: 0, kind: input, shape index: {}]
  %s1 = inlined_call_operand.vmem [shape: f32[32,128], index: 1, kind: input, shape index: {}]
  %s2 = inlined_call_operand.vmem [shape: f32[1,128], index: 2, kind: input, shape index: {}]
  %s3 = inlined_call_operand.vmem [shape: f32[128,16], index: 3, kind: input, shape index: {}]
  %s4 = inlined_call_operand.vmem [shape: f32[1,16], index: 4, kind: input, shape index: {}]
  %s5 = inlined_call_operand.hbm [shape: f32[8,16], index: 5, kind: output, shape index: {}]
  %s6 = sld [smem:[#allocation0]]
  $region30: #{tpu_custom_call.1} parent=0
    _
  %s8 = ssub.s32 1, %s6
  %s9 = scalar_select 0, %s8, %s6
  $region1: #{tpu_custom_call.1} parent=0
    #allocation2 [shape = 'u8[4096]{0}', space=vmem, size = 0x1000, scoped, tag = 'output window, operand 0, single buffered']
    #allocation3 [shape = 's32[1]{0}', space=sflag, size = 0x4, scoped, tag = 'scoped memory for tpu_custom_call.1']
    %10 = vsyncpa [#allocation3], 0
    // Predicated region
    $region2: #{tpu_custom_call.1} parent=1 // pred_check
      _
    $region3: #{tpu_custom_call.1} parent=1 // pred_check_branch
      %12 = sbr.rel (0) target = $region5
    $region4: #{tpu_custom_call.1} parent=1 // pred_region
      _
    $region5: #{tpu_custom_call.1} parent=1 // pred_fallthru
      _
    // Predicated region
    $region6: #{tpu_custom_call.1} parent=1 // pred_check
      _
    $region7: #{tpu_custom_call.1} parent=1 // pred_check_branch
      %14 = sbr.rel (0) target = $region9
    $region8: #{tpu_custom_call.1} parent=1 // pred_region
      _
    $region9: #{tpu_custom_call.1} parent=1 // pred_fallthru
      _
    // Predicated region
    $region10: #{tpu_custom_call.1} parent=1 // pred_check
      _
    $region11: #{tpu_custom_call.1} parent=1 // pred_check_branch
      %16 = sbr.rel (0) target = $region13
    $region12: #{tpu_custom_call.1} parent=1 // pred_region
      _
    $region13: #{tpu_custom_call.1} parent=1 // pred_fallthru
      _
    // Predicated region
    $region14: #{tpu_custom_call.1} parent=1 // pred_check
      _
    $region15: #{tpu_custom_call.1} parent=1 // pred_check_branch
      %18 = sbr.rel (0) target = $region17
    $region16: #{tpu_custom_call.1} parent=1 // pred_region
      _
    $region17: #{tpu_custom_call.1} parent=1 // pred_fallthru
      _
    // Predicated region
    $region18: #{tpu_custom_call.1} parent=1 // pred_check
      _
    $region19: #{tpu_custom_call.1} parent=1 // pred_check_branch
      %20 = sbr.rel (0) target = $region21
    $region20: #{tpu_custom_call.1} parent=1 // pred_region
      _
    $region21: #{tpu_custom_call.1} parent=1 // pred_fallthru
      _
    %v21 = vld [vmem:[%s0] sm:$0xff]
    %v22 = vld [vmem:[%s1] sm:$0xff]
    %v23 = vld [vmem:[%s1 + $0x8] sm:$0xff]
    %v24 = vld [vmem:[%s1 + $0x10] sm:$0xff]
    %v25 = vld [vmem:[%s1 + $0x18] sm:$0xff]
    %v26 = vld [vmem:[%s2] sm:$0x1]
    %v28 = vlaneseq
    %v29 = vshrl.u32 %v28, 7
    %v30 = vsub.s32 0, %v29
    %v31 = vrot.slane %v26, %v30
    %vm33 = vcmask 261120
    %v35 = vsel %vm33, %v21, 0
    %37 = vmatprep.subr.mxu0 0.0
    %38 = vmatpush1.msra.mxu0 %v22
    %39 = vmatprep.subr.mxu0 0.0
    %40 = vmatpush1.msra.mxu0 %v23
    %41 = vmatprep.subr.mxu0 0.0
    %42 = vmatpush1.msra.mxu0 %v24
    %43 = vmatprep.subr.mxu0 0.0
    %44 = vmatpush1.msra.mxu0 %v25
    %45 = vmatprep.subr.mxu0 0.0
    %46 = vmatpush1.msra.mxu0 0.0
    %47 = vmatprep.subr.mxu0 0.0
    %48 = vmatpush1.msra.mxu0 0.0
    %49 = vmatprep.subr.mxu0 0.0
    %50 = vmatpush1.msra.mxu0 0.0
    %51 = vmatprep.subr.mxu0 0.0
    %52 = vmatpush1.msra.mxu0 0.0
    %53 = vmatprep.subr.mxu0 0.0
    %54 = vmatpush1.msra.mxu0 0.0
    %55 = vmatprep.subr.mxu0 0.0
    %56 = vmatpush1.msra.mxu0 0.0
    %57 = vmatprep.subr.mxu0 0.0
    %58 = vmatpush1.msra.mxu0 0.0
    %59 = vmatprep.subr.mxu0 0.0
    %60 = vmatpush1.msra.mxu0 0.0
    %61 = vmatprep.subr.mxu0 0.0
    %62 = vmatpush1.msra.mxu0 0.0
    %63 = vmatprep.subr.mxu0 0.0
    %64 = vmatpush1.msra.mxu0 0.0
    %65 = vmatprep.subr.mxu0 0.0
    %66 = vmatpush1.msra.mxu0 0.0
    %67 = vmatprep.subr.mxu0 0.0
    %68 = vmatpush1.msra.mxu0 0.0
    %69 = vmatprep.subr.mxu0 0.0
    %70 = vmatpush1.msra.mxu0 0.0
    %71 = vmatprep.subr.mxu0 0.0
    %72 = vmatpush1.msra.mxu0 0.0
    %73 = vmatprep.subr.mxu0 0.0
    %74 = vmatpush1.msra.mxu0 0.0
    %75 = vmatprep.subr.mxu0 0.0
    %76 = vmatpush1.msra.mxu0 0.0
    %77 = vmatprep.subr.mxu0 0.0
    %78 = vmatpush1.msra.mxu0 0.0
    %79 = vmatprep.subr.mxu0 0.0
    %80 = vmatpush1.msra.mxu0 0.0
    %81 = vmatprep.subr.mxu0 0.0
    %82 = vmatpush1.msra.mxu0 0.0
    %83 = vmatprep.subr.mxu0 0.0
    %84 = vmatpush1.msra.mxu0 0.0
    %85 = vmatprep.subr.mxu0 0.0
    %86 = vmatpush1.msra.mxu0 0.0
    %87 = vmatprep.subr.mxu0 0.0
    %88 = vmatpush1.msra.mxu0 0.0
    %89 = vmatprep.subr.mxu0 0.0
    %90 = vmatpush1.msra.mxu0 0.0
    %91 = vmatprep.subr.mxu0 0.0
    %92 = vmatpush1.msra.mxu0 0.0
    %93 = vmatprep.subr.mxu0 0.0
    %94 = vmatpush1.msra.mxu0 0.0
    %95 = vmatprep.subr.mxu0 0.0
    %96 = vmatpush1.msra.mxu0 0.0
    %97 = vmatprep.subr.mxu0 0.0
    %98 = vmatpush1.msra.mxu0 0.0
    %99 = vmatprep.subr.mxu0 0.0
    %100 = vmatpush1.msra.mxu0 0.0
    %101 = vmatprep.mubr.f32.mxu0 0.0
    %102 = vmatmul.mubr.f32.gmra.mrb[0].mxu0 %v35
    %v103 = vpop.f32.mrb[0].mxu0
    %v104 = vadd.f32 %v31, %v103
    %v105 = vpop.f32.mrb[0].mxu0
    %106 = vdwg.mxu0
    %v107 = vmax.f32 %v104, 0.0
    %v108 = vld [vmem:[%s3] sm:$0xff]
    %v109 = vld [vmem:[%s3 + $0x8] sm:$0xff]
    %v110 = vld [vmem:[%s3 + $0x10] sm:$0xff]
    %v111 = vld [vmem:[%s3 + $0x18] sm:$0xff]
    %v112 = vld [vmem:[%s3 + $0x20] sm:$0xff]
    %v113 = vld [vmem:[%s3 + $0x28] sm:$0xff]
    %v114 = vld [vmem:[%s3 + $0x30] sm:$0xff]
    %v115 = vld [vmem:[%s3 + $0x38] sm:$0xff]
    %v116 = vld [vmem:[%s3 + $0x40] sm:$0xff]
    %v117 = vld [vmem:[%s3 + $0x48] sm:$0xff]
    %v118 = vld [vmem:[%s3 + $0x50] sm:$0xff]
    %v119 = vld [vmem:[%s3 + $0x58] sm:$0xff]
    %v120 = vld [vmem:[%s3 + $0x60] sm:$0xff]
    %v121 = vld [vmem:[%s3 + $0x68] sm:$0xff]
    %v122 = vld [vmem:[%s3 + $0x70] sm:$0xff]
    %v123 = vld [vmem:[%s3 + $0x78] sm:$0xff]
    %v124 = vld [vmem:[%s4] sm:$0x1]
    %v126 = vlaneseq
    %v127 = vshrl.u32 %v126, 7
    %v128 = vsub.s32 0, %v127
    %v129 = vrot.slane %v124, %v128
    %131 = vmatprep.subr.mxu0 0.0
    %132 = vmatpush1.msra.mxu0 %v108
    %133 = vmatprep.subr.mxu0 0.0
    %134 = vmatpush1.msra.mxu0 %v109
    %135 = vmatprep.subr.mxu0 0.0
    %136 = vmatpush1.msra.mxu0 %v110
    %137 = vmatprep.subr.mxu0 0.0
    %138 = vmatpush1.msra.mxu0 %v111
    %139 = vmatprep.subr.mxu0 0.0
    %140 = vmatpush1.msra.mxu0 %v112
    %141 = vmatprep.subr.mxu0 0.0
    %142 = vmatpush1.msra.mxu0 %v113
    %143 = vmatprep.subr.mxu0 0.0
    %144 = vmatpush1.msra.mxu0 %v114
    %145 = vmatprep.subr.mxu0 0.0
    %146 = vmatpush1.msra.mxu0 %v115
    %147 = vmatprep.subr.mxu0 0.0
    %148 = vmatpush1.msra.mxu0 %v116
    %149 = vmatprep.subr.mxu0 0.0
    %150 = vmatpush1.msra.mxu0 %v117
    %151 = vmatprep.subr.mxu0 0.0
    %152 = vmatpush1.msra.mxu0 %v118
    %153 = vmatprep.subr.mxu0 0.0
    %154 = vmatpush1.msra.mxu0 %v119
    %155 = vmatprep.subr.mxu0 0.0
    %156 = vmatpush1.msra.mxu0 %v120
    %157 = vmatprep.subr.mxu0 0.0
    %158 = vmatpush1.msra.mxu0 %v121
    %159 = vmatprep.subr.mxu0 0.0
    %160 = vmatpush1.msra.mxu0 %v122
    %161 = vmatprep.subr.mxu0 0.0
    %162 = vmatpush1.msra.mxu0 %v123
    %163 = vmatprep.subr.mxu0 0.0
    %164 = vmatpush1.msra.mxu0 0.0
    %165 = vmatprep.subr.mxu0 0.0
    %166 = vmatpush1.msra.mxu0 0.0
    %167 = vmatprep.subr.mxu0 0.0
    %168 = vmatpush1.msra.mxu0 0.0
    %169 = vmatprep.subr.mxu0 0.0
    %170 = vmatpush1.msra.mxu0 0.0
    %171 = vmatprep.subr.mxu0 0.0
    %172 = vmatpush1.msra.mxu0 0.0
    %173 = vmatprep.subr.mxu0 0.0
    %174 = vmatpush1.msra.mxu0 0.0
    %175 = vmatprep.subr.mxu0 0.0
    %176 = vmatpush1.msra.mxu0 0.0
    %177 = vmatprep.subr.mxu0 0.0
    %178 = vmatpush1.msra.mxu0 0.0
    %179 = vmatprep.subr.mxu0 0.0
    %180 = vmatpush1.msra.mxu0 0.0
    %181 = vmatprep.subr.mxu0 0.0
    %182 = vmatpush1.msra.mxu0 0.0
    %183 = vmatprep.subr.mxu0 0.0
    %184 = vmatpush1.msra.mxu0 0.0
    %185 = vmatprep.subr.mxu0 0.0
    %186 = vmatpush1.msra.mxu0 0.0
    %187 = vmatprep.subr.mxu0 0.0
    %188 = vmatpush1.msra.mxu0 0.0
    %189 = vmatprep.subr.mxu0 0.0
    %190 = vmatpush1.msra.mxu0 0.0
    %191 = vmatprep.subr.mxu0 0.0
    %192 = vmatpush1.msra.mxu0 0.0
    %193 = vmatprep.subr.mxu0 0.0
    %194 = vmatpush1.msra.mxu0 0.0
    %195 = vmatprep.mubr.f32.mxu0 0.0
    %196 = vmatmul.mubr.f32.gmra.mrb[0].mxu0 %v107
    %v197 = vpop.f32.mrb[0].mxu0
    %v198 = vadd.f32 %v129, %v197
    %v199 = vpop.f32.mrb[0].mxu0
    %200 = vdwg.mxu0
    %v201 = vtanh.pop %v198
    %vm202 = vcmask 130048
    %203 = vst.msk [vmem:[#allocation2] sm:$0xff] %vm202, %v201
    // Predicated region
    $region22: #{tpu_custom_call.1} parent=1 // pred_check
      _
    $region23: #{tpu_custom_call.1} parent=1 // pred_check_branch
      %205 = sbr.rel (0) target = $region25
    $region24: #{tpu_custom_call.1} parent=1 // pred_region
      %s207 = ssub.s32 128, 128
      %208 = vsyncadd [#allocation3], %s207
      %s210 = sshll.u32 [#allocation2], 4
      %s211 = int_to_ptr.vmem [resolvable:$true] %s210
      %213 = dma.vmem_to_hbm [thread:$0]  %s211, 128, %s5, [#allocation3]
    $region25: #{tpu_custom_call.1} parent=1 // pred_fallthru
      _
    // Predicated region
    $region26: #{tpu_custom_call.1} parent=1 // pred_check
      _
    $region27: #{tpu_custom_call.1} parent=1 // pred_check_branch
      %215 = sbr.rel (0) target = $region29
    $region28: #{tpu_custom_call.1} parent=1 // pred_region
      %216 = dma.done [#allocation3], 128
    $region29: #{tpu_custom_call.1} parent=1 // pred_fallthru
      _
    %217 = vsyncpa [#allocation3], 1

</llo_original>
